<compile_context>
chip_gen: v7x
topology: tpu7x:2x2x1
jax: 0.10.0
libtpu: 0.0.40
codegen_flags: <defaults>
</compile_context>

<pallas_src>
import functools

import jax
import jax.numpy as jnp
from jax.experimental import pallas as pl
from jax.experimental.pallas import tpu as pltpu

BN_EPS = 1e-5
LEAKY_SLOPE = 0.2
LANE = 128
SUBLANE_BF16 = 16


def _round_up(n, m):
    return ((n + m - 1) // m) * m


def _pad2(a, rows, cols, fill=0.0):
    return jnp.pad(a, ((0, rows - a.shape[0]), (0, cols - a.shape[1])),
                   constant_values=fill)


def _leaky_relu(x):
    return jnp.where(x >= 0, x, LEAKY_SLOPE * x)


def _batchnorm_train(x, gamma, beta, rowmask, inv_b):
    # PyTorch BatchNorm1d training mode: batch mean and *biased* variance over
    # the true (unpadded) batch rows only.  Centered two-pass variance matches
    # PyTorch and avoids E[x^2]-E[x]^2 cancellation.
    xm = x * rowmask
    mean = jnp.sum(xm, axis=0, keepdims=True) * inv_b
    d = (x - mean) * rowmask
    var = jnp.sum(d * d, axis=0, keepdims=True) * inv_b
    scale = jax.lax.rsqrt(var + BN_EPS) * gamma
    return (x - mean) * scale + beta


def decoder_fc_kernel(
    x_ref, lib_ref, rowmask_ref,
    w1_ref, b1_ref, g1_ref, be1_ref,
    w2_ref, b2_ref, g2_ref, be2_ref,
    wcat_ref, wmask_ref,
    scale_out_ref, disp_out_ref,
    *, inv_b,
):
    wp = scale_out_ref.shape[1]          # padded W (multiple of 128)
    rowmask = rowmask_ref[...]           # [Bp, 1], 1.0 valid / 0.0 padded row

    # --- fc block 0: Linear(L -> H0) + LeakyReLU(0.2) + BatchNorm1d(H0) ---
    h = jnp.dot(x_ref[...], w1_ref[...], preferred_element_type=jnp.float32)
    h = _leaky_relu(h + b1_ref[...])
    h = _batchnorm_train(h, g1_ref[...], be1_ref[...], rowmask, inv_b)

    # --- fc block 1: Linear(H0 -> H1) + LeakyReLU(0.2) + BatchNorm1d(H1) ---
    h = jnp.dot(h.astype(jnp.bfloat16), w2_ref[...],
                preferred_element_type=jnp.float32)
    h = _leaky_relu(h + b2_ref[...])
    h = _batchnorm_train(h, g2_ref[...], be2_ref[...], rowmask, inv_b)

    # --- fused heads: single MXU pass over [w_out | w_disp] ([H1p, 2*Wp]) ---
    z = jnp.dot(h.astype(jnp.bfloat16), wcat_ref[...],
                preferred_element_type=jnp.float32)          # [Bp, 2*Wp]
    logits = z[:, :wp] + wmask_ref[...]   # additive 0 / -1e30 padded-col mask
    d = z[:, wp:]

    # softmax(dim=1) with lib_size folded into the normalization factor.
    m = jnp.max(logits, axis=1, keepdims=True)
    e = jnp.exp(logits - m)
    denom = jnp.sum(e, axis=1, keepdims=True)
    factor = lib_ref[...] * pl.reciprocal(denom)   # exact EUP reciprocal
    scale_out_ref[...] = (e * factor).astype(scale_out_ref.dtype)

    # dispersion head: numerically stable softplus.
    disp_out_ref[...] = jnp.logaddexp(d, 0.0).astype(disp_out_ref.dtype)


def prepare_params(params):
    """One-time weight prep (call once, reuse every forward):
    pad to lane-dense (multiple-of-128) shapes, cast matmul operands to bf16,
    fuse the two head weights into wcat, build the additive softmax column
    mask.  Per-call forwards then move zero weight bytes outside the kernel."""
    latent, h0 = params["w1"].shape
    h1 = params["w2"].shape[1]
    W = params["w_out"].shape[1]

    Lp = _round_up(latent, LANE)
    H0p = _round_up(h0, LANE)
    H1p = _round_up(h1, LANE)
    Wp = _round_up(W, LANE)

    wcat = jnp.concatenate(
        [_pad2(params["w_out"], H1p, Wp), _pad2(params["w_disp"], H1p, Wp)],
        axis=1).astype(jnp.bfloat16)                          # [H1p, 2*Wp]
    col = jnp.arange(Wp, dtype=jnp.int32)[None, :]
    wmask = jnp.where(col < W, 0.0, -1e30).astype(jnp.float32)  # [1, Wp]

    return {
        "dims": (latent, h0, h1, W, Lp, H0p, H1p, Wp),
        "w1": _pad2(params["w1"], Lp, H0p).astype(jnp.bfloat16),
        "b1": _pad2(params["b1"], 1, H0p).astype(jnp.float32),
        "g1": _pad2(params["g1"], 1, H0p, fill=1.0).astype(jnp.float32),
        "be1": _pad2(params["be1"], 1, H0p).astype(jnp.float32),
        "w2": _pad2(params["w2"], H0p, H1p).astype(jnp.bfloat16),
        "b2": _pad2(params["b2"], 1, H1p).astype(jnp.float32),
        "g2": _pad2(params["g2"], 1, H1p, fill=1.0).astype(jnp.float32),
        "be2": _pad2(params["be2"], 1, H1p).astype(jnp.float32),
        "wcat": wcat,
        "wmask": wmask,
    }


def _estimate_vmem_bytes(Bp, Lp, H0p, H1p, Wp):
    # Actual padded buffer footprint + 2x headroom for compiler temporaries.
    inputs = (Bp * Lp * 2                      # x (bf16)
              + 2 * Bp * LANE * 4              # lib_size, rowmask (lane-padded)
              + Lp * H0p * 2 + H0p * H1p * 2   # w1, w2 (bf16)
              + H1p * 2 * Wp * 2               # wcat (bf16)
              + 6 * 8 * max(H0p, H1p) * 4      # biases / BN params (f32)
              + 8 * Wp * 4)                    # wmask
    outputs = 2 * Bp * Wp * 2                  # bf16 heads
    interm = Bp * (H0p + H1p + 4 * Wp) * 4     # f32 activations / exp / z
    est = 2 * (inputs + outputs + interm) + (2 << 20)
    est = max(est, 4 << 20)
    return min(_round_up(est, 1 << 20), 64 << 20)


def decoder_fc_forward(x, lib_size, prepped, *, out_dtype=jnp.bfloat16):
    """Forward pass. `prepped` is the output of prepare_params (one-time).
    Supports arbitrary B; batch padding is masked out of the BN statistics.
    Larger B per call (up to a few thousand rows at these dims) stays fully
    VMEM-resident and amortizes the fixed launch + weight-DMA cost."""
    B = x.shape[0]
    latent, h0, h1, W, Lp, H0p, H1p, Wp = prepped["dims"]

    Bp = _round_up(B, SUBLANE_BF16)
    x_p = _pad2(x, Bp, Lp).astype(jnp.bfloat16)
    lib_p = _pad2(lib_size.astype(jnp.float32), Bp, 1)
    rowmask = (jnp.arange(Bp) < B).astype(jnp.float32)[:, None]   # [Bp, 1]

    args = (x_p, lib_p, rowmask,
            prepped["w1"], prepped["b1"], prepped["g1"], prepped["be1"],
            prepped["w2"], prepped["b2"], prepped["g2"], prepped["be2"],
            prepped["wcat"], prepped["wmask"])

    vmem_spec = pl.BlockSpec(memory_space=pltpu.MemorySpace.VMEM)

    scale_p, disp_p = pl.pallas_call(
        functools.partial(decoder_fc_kernel, inv_b=1.0 / B),
        out_shape=(
            jax.ShapeDtypeStruct((Bp, Wp), out_dtype),
            jax.ShapeDtypeStruct((Bp, Wp), out_dtype),
        ),
        in_specs=[vmem_spec] * len(args),
        out_specs=(vmem_spec, vmem_spec),
        compiler_params=pltpu.CompilerParams(
            vmem_limit_bytes=_estimate_vmem_bytes(Bp, Lp, H0p, H1p, Wp)),
    )(*args)
    # NOTE: for production-size W, tile the fused head over W with a
    # "parallel" grid axis (second v7x TensorCore) and a two-pass softmax;
    # gridless is right at these shapes.
    return scale_p[:B, :W], disp_p[:B, :W]


def make_params(key, latent_dim, hidden_dims, in_W):
    # hidden_dims given as in the PyTorch ctor; forward uses them reversed.
    hdims = hidden_dims[::-1]
    h0, h1 = hdims[0], hdims[1]
    ks = jax.random.split(key, 6)
    s = 0.1
    return {
        # Linear weights stored [in, out] (transposed vs PyTorch's [out, in]).
        "w1": jax.random.normal(ks[0], (latent_dim, h0), jnp.float32) * s,
        "b1": jax.random.normal(ks[1], (1, h0), jnp.float32) * s,
        "g1": jnp.ones((1, h0), jnp.float32),
        "be1": jnp.zeros((1, h0), jnp.float32),
        "w2": jax.random.normal(ks[2], (h0, h1), jnp.float32) * s,
        "b2": jax.random.normal(ks[3], (1, h1), jnp.float32) * s,
        "g2": jnp.ones((1, h1), jnp.float32),
        "be2": jnp.zeros((1, h1), jnp.float32),
        "w_out": jax.random.normal(ks[4], (h1, in_W), jnp.float32) * s,
        "w_disp": jax.random.normal(ks[5], (h1, in_W), jnp.float32) * s,
    }


def reference_forward(x, lib_size, p):
    # Pure-JAX f32 reference mirroring the PyTorch forward (training-mode BN).
    h = x @ p["w1"] + p["b1"]
    h = jnp.where(h >= 0, h, LEAKY_SLOPE * h)
    mean = h.mean(0, keepdims=True)
    var = ((h - mean) ** 2).mean(0, keepdims=True)
    h = (h - mean) / jnp.sqrt(var + BN_EPS) * p["g1"] + p["be1"]

    h = h @ p["w2"] + p["b2"]
    h = jnp.where(h >= 0, h, LEAKY_SLOPE * h)
    mean = h.mean(0, keepdims=True)
    var = ((h - mean) ** 2).mean(0, keepdims=True)
    h = (h - mean) / jnp.sqrt(var + BN_EPS) * p["g2"] + p["be2"]

    logits = h @ p["w_out"]
    scale = jax.nn.softmax(logits, axis=1)
    disp = jax.nn.softplus(h @ p["w_disp"])
    return scale * lib_size, disp


if __name__ == "__main__":
    key = jax.random.PRNGKey(0)
    k_x, k_lib, k_p = jax.random.split(key, 3)

    B = 13                   # deliberately not a multiple of 8/16: exercises
                             # the masked-BN batch-padding path.
    latent_dim = 16
    hidden_dims = [32, 64]   # ctor order; forward uses reversed -> [64, 32]
    in_W = 200               # not a multiple of 128: exercises the column mask.

    x = jax.random.normal(k_x, (B, latent_dim), jnp.float32)
    lib_size = jnp.exp(jax.random.normal(k_lib, (B, 1), jnp.float32))
    params = make_params(k_p, latent_dim, hidden_dims, in_W)

    prepped = prepare_params(params)              # one-time weight prep
    scale_lib, disp = decoder_fc_forward(x, lib_size, prepped)
    jax.block_until_ready((scale_lib, disp))

    ref_scale_lib, ref_disp = reference_forward(x, lib_size, params)
    # bf16 matmul operands + bf16 outputs -> intentionally looser tolerance
    # than an all-f32 reference.
    assert jnp.allclose(scale_lib.astype(jnp.float32), ref_scale_lib,
                        atol=1e-2, rtol=5e-2)
    assert jnp.allclose(disp.astype(jnp.float32), ref_disp,
                        atol=1e-2, rtol=5e-2)

    print("KERNEL_OK")
</pallas_src>

<mosaic_0001>
module attributes {stable_mosaic.version = 11 : i64} {
  func.func @decoder_fc_kernel(%arg0: memref<16x128xbf16, #tpu.memory_space<vmem>>, %arg1: memref<16x1xf32, #tpu.memory_space<vmem>>, %arg2: memref<16x1xf32, #tpu.memory_space<vmem>>, %arg3: memref<128x128xbf16, #tpu.memory_space<vmem>>, %arg4: memref<1x128xf32, #tpu.memory_space<vmem>>, %arg5: memref<1x128xf32, #tpu.memory_space<vmem>>, %arg6: memref<1x128xf32, #tpu.memory_space<vmem>>, %arg7: memref<128x128xbf16, #tpu.memory_space<vmem>>, %arg8: memref<1x128xf32, #tpu.memory_space<vmem>>, %arg9: memref<1x128xf32, #tpu.memory_space<vmem>>, %arg10: memref<1x128xf32, #tpu.memory_space<vmem>>, %arg11: memref<128x512xbf16, #tpu.memory_space<vmem>>, %arg12: memref<1x256xf32, #tpu.memory_space<vmem>>, %arg13: memref<16x256xbf16, #tpu.memory_space<vmem>>, %arg14: memref<16x256xbf16, #tpu.memory_space<vmem>>) attributes {dimension_semantics = [], scalar_prefetch = 0 : i64, scratch_operands = 0 : i64, tpu.core_type = #tpu.core_type<tc>} {
    %c0 = arith.constant 0 : index
    %c0_0 = arith.constant 0 : index
    %0 = vector.load %arg2[%c0, %c0_0] : memref<16x1xf32, #tpu.memory_space<vmem>>, vector<16x1xf32>
    %c0_1 = arith.constant 0 : index
    %c0_2 = arith.constant 0 : index
    %1 = vector.load %arg0[%c0_1, %c0_2] : memref<16x128xbf16, #tpu.memory_space<vmem>>, vector<16x128xbf16>
    %c0_3 = arith.constant 0 : index
    %c0_4 = arith.constant 0 : index
    %2 = vector.load %arg3[%c0_3, %c0_4] : memref<128x128xbf16, #tpu.memory_space<vmem>>, vector<128x128xbf16>
    %cst = arith.constant dense<0.000000e+00> : vector<16x128xf32>
    %3 = tpu.matmul %1, %2, %cst {dimension_numbers = #tpu.dot_dimension_numbers<[1], [0], [0], [1], [0, 0, 1, 1], [], []>} : vector<16x128xbf16>, vector<128x128xbf16>, vector<16x128xf32> -> vector<16x128xf32>
    %c0_5 = arith.constant 0 : index
    %c0_6 = arith.constant 0 : index
    %4 = vector.load %arg4[%c0_5, %c0_6] : memref<1x128xf32, #tpu.memory_space<vmem>>, vector<1x128xf32>
    %5 = vector.broadcast %4 : vector<1x128xf32> to vector<16x128xf32>
    %6 = arith.addf %3, %5 : vector<16x128xf32>
    %cst_7 = arith.constant 0.000000e+00 : f32
    %7 = vector.broadcast %cst_7 : f32 to vector<16x128xf32>
    %8 = arith.cmpf oge, %6, %7 : vector<16x128xf32>
    %cst_8 = arith.constant 2.000000e-01 : f32
    %9 = vector.broadcast %cst_8 : f32 to vector<16x128xf32>
    %10 = arith.mulf %9, %6 : vector<16x128xf32>
    %11 = arith.select %8, %6, %10 : vector<16x128xi1>, vector<16x128xf32>
    %c0_9 = arith.constant 0 : index
    %c0_10 = arith.constant 0 : index
    %12 = vector.load %arg5[%c0_9, %c0_10] : memref<1x128xf32, #tpu.memory_space<vmem>>, vector<1x128xf32>
    %c0_11 = arith.constant 0 : index
    %c0_12 = arith.constant 0 : index
    %13 = vector.load %arg6[%c0_11, %c0_12] : memref<1x128xf32, #tpu.memory_space<vmem>>, vector<1x128xf32>
    %14 = vector.broadcast %0 : vector<16x1xf32> to vector<16x128xf32>
    %15 = arith.mulf %11, %14 : vector<16x128xf32>
    %cst_13 = arith.constant dense<0.000000e+00> : vector<128xf32>
    %16 = vector.multi_reduction <add>, %15, %cst_13 [0] : vector<16x128xf32> to vector<128xf32>
    %17 = vector.shape_cast %16 : vector<128xf32> to vector<1x128xf32>
    %cst_14 = arith.constant 0.0769230798 : f32
    %18 = vector.broadcast %cst_14 : f32 to vector<1x128xf32>
    %19 = arith.mulf %17, %18 : vector<1x128xf32>
    %20 = vector.broadcast %19 : vector<1x128xf32> to vector<16x128xf32>
    %21 = arith.subf %11, %20 : vector<16x128xf32>
    %22 = vector.broadcast %0 : vector<16x1xf32> to vector<16x128xf32>
    %23 = arith.mulf %21, %22 : vector<16x128xf32>
    %24 = arith.mulf %23, %23 : vector<16x128xf32>
    %cst_15 = arith.constant dense<0.000000e+00> : vector<128xf32>
    %25 = vector.multi_reduction <add>, %24, %cst_15 [0] : vector<16x128xf32> to vector<128xf32>
    %26 = vector.shape_cast %25 : vector<128xf32> to vector<1x128xf32>
    %cst_16 = arith.constant 0.0769230798 : f32
    %27 = vector.broadcast %cst_16 : f32 to vector<1x128xf32>
    %28 = arith.mulf %26, %27 : vector<1x128xf32>
    %cst_17 = arith.constant 9.99999974E-6 : f32
    %29 = vector.broadcast %cst_17 : f32 to vector<1x128xf32>
    %30 = arith.addf %28, %29 : vector<1x128xf32>
    %31 = math.rsqrt %30 : vector<1x128xf32>
    %32 = arith.mulf %31, %12 : vector<1x128xf32>
    %33 = vector.broadcast %19 : vector<1x128xf32> to vector<16x128xf32>
    %34 = arith.subf %11, %33 : vector<16x128xf32>
    %35 = vector.broadcast %32 : vector<1x128xf32> to vector<16x128xf32>
    %36 = arith.mulf %34, %35 : vector<16x128xf32>
    %37 = vector.broadcast %13 : vector<1x128xf32> to vector<16x128xf32>
    %38 = arith.addf %36, %37 : vector<16x128xf32>
    %39 = arith.truncf %38 : vector<16x128xf32> to vector<16x128xbf16>
    %c0_18 = arith.constant 0 : index
    %c0_19 = arith.constant 0 : index
    %40 = vector.load %arg7[%c0_18, %c0_19] : memref<128x128xbf16, #tpu.memory_space<vmem>>, vector<128x128xbf16>
    %cst_20 = arith.constant dense<0.000000e+00> : vector<16x128xf32>
    %41 = tpu.matmul %39, %40, %cst_20 {dimension_numbers = #tpu.dot_dimension_numbers<[1], [0], [0], [1], [0, 0, 1, 1], [], []>} : vector<16x128xbf16>, vector<128x128xbf16>, vector<16x128xf32> -> vector<16x128xf32>
    %c0_21 = arith.constant 0 : index
    %c0_22 = arith.constant 0 : index
    %42 = vector.load %arg8[%c0_21, %c0_22] : memref<1x128xf32, #tpu.memory_space<vmem>>, vector<1x128xf32>
    %43 = vector.broadcast %42 : vector<1x128xf32> to vector<16x128xf32>
    %44 = arith.addf %41, %43 : vector<16x128xf32>
    %cst_23 = arith.constant 0.000000e+00 : f32
    %45 = vector.broadcast %cst_23 : f32 to vector<16x128xf32>
    %46 = arith.cmpf oge, %44, %45 : vector<16x128xf32>
    %cst_24 = arith.constant 2.000000e-01 : f32
    %47 = vector.broadcast %cst_24 : f32 to vector<16x128xf32>
    %48 = arith.mulf %47, %44 : vector<16x128xf32>
    %49 = arith.select %46, %44, %48 : vector<16x128xi1>, vector<16x128xf32>
    %c0_25 = arith.constant 0 : index
    %c0_26 = arith.constant 0 : index
    %50 = vector.load %arg9[%c0_25, %c0_26] : memref<1x128xf32, #tpu.memory_space<vmem>>, vector<1x128xf32>
    %c0_27 = arith.constant 0 : index
    %c0_28 = arith.constant 0 : index
    %51 = vector.load %arg10[%c0_27, %c0_28] : memref<1x128xf32, #tpu.memory_space<vmem>>, vector<1x128xf32>
    %52 = vector.broadcast %0 : vector<16x1xf32> to vector<16x128xf32>
    %53 = arith.mulf %49, %52 : vector<16x128xf32>
    %cst_29 = arith.constant dense<0.000000e+00> : vector<128xf32>
    %54 = vector.multi_reduction <add>, %53, %cst_29 [0] : vector<16x128xf32> to vector<128xf32>
    %55 = vector.shape_cast %54 : vector<128xf32> to vector<1x128xf32>
    %cst_30 = arith.constant 0.0769230798 : f32
    %56 = vector.broadcast %cst_30 : f32 to vector<1x128xf32>
    %57 = arith.mulf %55, %56 : vector<1x128xf32>
    %58 = vector.broadcast %57 : vector<1x128xf32> to vector<16x128xf32>
    %59 = arith.subf %49, %58 : vector<16x128xf32>
    %60 = vector.broadcast %0 : vector<16x1xf32> to vector<16x128xf32>
    %61 = arith.mulf %59, %60 : vector<16x128xf32>
    %62 = arith.mulf %61, %61 : vector<16x128xf32>
    %cst_31 = arith.constant dense<0.000000e+00> : vector<128xf32>
    %63 = vector.multi_reduction <add>, %62, %cst_31 [0] : vector<16x128xf32> to vector<128xf32>
    %64 = vector.shape_cast %63 : vector<128xf32> to vector<1x128xf32>
    %cst_32 = arith.constant 0.0769230798 : f32
    %65 = vector.broadcast %cst_32 : f32 to vector<1x128xf32>
    %66 = arith.mulf %64, %65 : vector<1x128xf32>
    %cst_33 = arith.constant 9.99999974E-6 : f32
    %67 = vector.broadcast %cst_33 : f32 to vector<1x128xf32>
    %68 = arith.addf %66, %67 : vector<1x128xf32>
    %69 = math.rsqrt %68 : vector<1x128xf32>
    %70 = arith.mulf %69, %50 : vector<1x128xf32>
    %71 = vector.broadcast %57 : vector<1x128xf32> to vector<16x128xf32>
    %72 = arith.subf %49, %71 : vector<16x128xf32>
    %73 = vector.broadcast %70 : vector<1x128xf32> to vector<16x128xf32>
    %74 = arith.mulf %72, %73 : vector<16x128xf32>
    %75 = vector.broadcast %51 : vector<1x128xf32> to vector<16x128xf32>
    %76 = arith.addf %74, %75 : vector<16x128xf32>
    %77 = arith.truncf %76 : vector<16x128xf32> to vector<16x128xbf16>
    %c0_34 = arith.constant 0 : index
    %c0_35 = arith.constant 0 : index
    %78 = vector.load %arg11[%c0_34, %c0_35] : memref<128x512xbf16, #tpu.memory_space<vmem>>, vector<128x512xbf16>
    %cst_36 = arith.constant dense<0.000000e+00> : vector<16x512xf32>
    %79 = tpu.matmul %77, %78, %cst_36 {dimension_numbers = #tpu.dot_dimension_numbers<[1], [0], [0], [1], [0, 0, 1, 1], [], []>} : vector<16x128xbf16>, vector<128x512xbf16>, vector<16x512xf32> -> vector<16x512xf32>
    %80 = vector.extract_strided_slice %79 {offsets = [0, 0], sizes = [16, 256], strides = [1, 1]} : vector<16x512xf32> to vector<16x256xf32>
    %c0_37 = arith.constant 0 : index
    %c0_38 = arith.constant 0 : index
    %81 = vector.load %arg12[%c0_37, %c0_38] : memref<1x256xf32, #tpu.memory_space<vmem>>, vector<1x256xf32>
    %82 = vector.broadcast %81 : vector<1x256xf32> to vector<16x256xf32>
    %83 = arith.addf %80, %82 : vector<16x256xf32>
    %84 = vector.extract_strided_slice %79 {offsets = [0, 256], sizes = [16, 256], strides = [1, 1]} : vector<16x512xf32> to vector<16x256xf32>
    %cst_39 = arith.constant dense<0xFF800000> : vector<16xf32>
    %85 = vector.multi_reduction <maximumf>, %83, %cst_39 [1] : vector<16x256xf32> to vector<16xf32>
    %86 = vector.shape_cast %85 : vector<16xf32> to vector<16x1xf32>
    %87 = vector.broadcast %86 : vector<16x1xf32> to vector<16x256xf32>
    %88 = arith.subf %83, %87 : vector<16x256xf32>
    %89 = math.exp %88 : vector<16x256xf32>
    %cst_40 = arith.constant dense<0.000000e+00> : vector<16xf32>
    %90 = vector.multi_reduction <add>, %89, %cst_40 [1] : vector<16x256xf32> to vector<16xf32>
    %91 = vector.shape_cast %90 : vector<16xf32> to vector<16x1xf32>
    %c0_41 = arith.constant 0 : index
    %c0_42 = arith.constant 0 : index
    %92 = vector.load %arg1[%c0_41, %c0_42] : memref<16x1xf32, #tpu.memory_space<vmem>>, vector<16x1xf32>
    %93 = tpu.reciprocal %91 : vector<16x1xf32> -> vector<16x1xf32>
    %94 = arith.mulf %92, %93 : vector<16x1xf32>
    %95 = vector.broadcast %94 : vector<16x1xf32> to vector<16x256xf32>
    %96 = arith.mulf %89, %95 : vector<16x256xf32>
    %97 = arith.truncf %96 : vector<16x256xf32> to vector<16x256xbf16>
    %c0_43 = arith.constant 0 : index
    %c0_44 = arith.constant 0 : index
    %98 = vector.load %arg13[%c0_43, %c0_44] : memref<16x256xbf16, #tpu.memory_space<vmem>>, vector<16x256xbf16>
    tpu.vector_store %arg13[%c0_43, %c0_44], %97 {strides = array<i32>} : memref<16x256xbf16, #tpu.memory_space<vmem>>, vector<16x256xbf16>,
    %cst_45 = arith.constant 0.000000e+00 : f32
    %99 = vector.broadcast %cst_45 : f32 to vector<16x256xf32>
    %100 = arith.maximumf %84, %99 : vector<16x256xf32>
    %101 = vector.broadcast %cst_45 : f32 to vector<16x256xf32>
    %102 = arith.subf %84, %101 : vector<16x256xf32>
    %103 = arith.cmpf one, %102, %102 : vector<16x256xf32>
    %104 = vector.broadcast %cst_45 : f32 to vector<16x256xf32>
    %105 = arith.addf %84, %104 : vector<16x256xf32>
    %106 = math.absf %102 : vector<16x256xf32>
    %cst_46 = arith.constant 0.000000e+00 : f32
    %107 = vector.broadcast %cst_46 : f32 to vector<16x256xf32>
    %108 = arith.subf %107, %106 : vector<16x256xf32>
    %109 = math.exp %108 : vector<16x256xf32>
    %110 = math.log1p %109 : vector<16x256xf32>
    %111 = arith.addf %100, %110 : vector<16x256xf32>
    %112 = arith.select %103, %105, %111 : vector<16x256xi1>, vector<16x256xf32>
    %113 = arith.truncf %112 : vector<16x256xf32> to vector<16x256xbf16>
    %c0_47 = arith.constant 0 : index
    %c0_48 = arith.constant 0 : index
    %114 = vector.load %arg14[%c0_47, %c0_48] : memref<16x256xbf16, #tpu.memory_space<vmem>>, vector<16x256xbf16>
    tpu.vector_store %arg14[%c0_47, %c0_48], %113 {strides = array<i32>} : memref<16x256xbf16, #tpu.memory_space<vmem>>, vector<16x256xbf16>,
    return
  }
}

</mosaic_0001>

<llo_original>
// kernel: tpu_custom_call.1
$region0: #{tpu_custom_call.1}
  #allocation0 [shape = 'u32[]', space=smem, size = 0x4, offset = 0x4, fixed_abs, tag = 'smem constant byte address 0x4 - core index']
  #allocation1 [shape = 'u32[144,128]{1,0:T(1,128)}', space=vmem, size = 0x12000, scoped, tag = 'internal scratch']
  %s0 = inlined_call_operand.vmem [shape: bf16[16,128], index: 0, kind: input, shape index: {}]
  %s1 = inlined_call_operand.vmem [shape: f32[16,1], index: 1, kind: input, shape index: {}]
  %s2 = inlined_call_operand.vmem [shape: f32[16,1], index: 2, kind: input, shape index: {}]
  %s3 = inlined_call_operand.hbm [shape: bf16[128,128], index: 3, kind: input, shape index: {}]
  %s4 = inlined_call_operand.vmem [shape: f32[1,128], index: 4, kind: input, shape index: {}]
  %s5 = inlined_call_operand.vmem [shape: f32[1,128], index: 5, kind: input, shape index: {}]
  %s6 = inlined_call_operand.vmem [shape: f32[1,128], index: 6, kind: input, shape index: {}]
  %s7 = inlined_call_operand.hbm [shape: bf16[128,128], index: 7, kind: input, shape index: {}]
  %s8 = inlined_call_operand.vmem [shape: f32[1,128], index: 8, kind: input, shape index: {}]
  %s9 = inlined_call_operand.vmem [shape: f32[1,128], index: 9, kind: input, shape index: {}]
  %s10 = inlined_call_operand.vmem [shape: f32[1,128], index: 10, kind: input, shape index: {}]
  %s11 = inlined_call_operand.hbm [shape: bf16[128,512], index: 11, kind: input, shape index: {}]
  %s12 = inlined_call_operand.vmem [shape: f32[1,256], index: 12, kind: input, shape index: {}]
  %s13 = inlined_call_operand.hbm [shape: bf16[16,256], index: 13, kind: output, shape index: {0}]
  %s14 = inlined_call_operand.hbm [shape: bf16[16,256], index: 14, kind: output, shape index: {1}]
  %15 = xla_tuple %s13, %s14
  %s16 = sld [smem:[#allocation0]]
  $region82: #{tpu_custom_call.1} parent=0
    _
  %s18 = ssub.s32 1, %s16
  %s19 = scalar_select 0, %s18, %s16
  $region1: #{tpu_custom_call.1} parent=0
    #allocation2 [shape = 'u8[32768]{0}', space=vmem, size = 0x8000, scoped, tag = 'input window, operand 3, single buffered']
    #allocation3 [shape = 's32[1]{0}', space=sflag, size = 0x4, scoped, tag = 'scoped memory for tpu_custom_call.1']
    #allocation4 [shape = 's32[1]{0}', space=sflag, size = 0x4, scoped, tag = 'scoped memory for tpu_custom_call.1']
    #allocation5 [shape = 'u8[32768]{0}', space=vmem, size = 0x8000, scoped, tag = 'input window, operand 7, single buffered']
    #allocation6 [shape = 's32[1]{0}', space=sflag, size = 0x4, scoped, tag = 'scoped memory for tpu_custom_call.1']
    #allocation7 [shape = 'u8[131072]{0}', space=vmem, size = 0x20000, scoped, tag = 'input window, operand 11, single buffered']
    #allocation8 [shape = 'u8[8192]{0}', space=vmem, size = 0x2000, scoped, tag = 'output window, operand 0, single buffered']
    #allocation9 [shape = 'u8[8192]{0}', space=vmem, size = 0x2000, scoped, tag = 'output window, operand 1, single buffered']
    #allocation10 [shape = 's32[1]{0}', space=sflag, size = 0x4, scoped, tag = 'scoped memory for tpu_custom_call.1']
    %20 = vsyncpa [#allocation3], 0
    %21 = vsyncpa [#allocation6], 0
    %22 = vsyncpa [#allocation4], 0
    %23 = vsyncpa [#allocation10], 0
    // Predicated region
    $region2: #{tpu_custom_call.1} parent=1 // pred_check
      _
    $region3: #{tpu_custom_call.1} parent=1 // pred_check_branch
      %25 = sbr.rel (0) target = $region5
    $region4: #{tpu_custom_call.1} parent=1 // pred_region
      _
    $region5: #{tpu_custom_call.1} parent=1 // pred_fallthru
      _
    // Predicated region
    $region6: #{tpu_custom_call.1} parent=1 // pred_check
      _
    $region7: #{tpu_custom_call.1} parent=1 // pred_check_branch
      %27 = sbr.rel (0) target = $region9
    $region8: #{tpu_custom_call.1} parent=1 // pred_region
      _
    $region9: #{tpu_custom_call.1} parent=1 // pred_fallthru
      _
    // Predicated region
    $region10: #{tpu_custom_call.1} parent=1 // pred_check
      _
    $region11: #{tpu_custom_call.1} parent=1 // pred_check_branch
      %29 = sbr.rel (0) target = $region13
    $region12: #{tpu_custom_call.1} parent=1 // pred_region
      _
    $region13: #{tpu_custom_call.1} parent=1 // pred_fallthru
      _
    // Predicated region
    $region14: #{tpu_custom_call.1} parent=1 // pred_check
      _
    $region15: #{tpu_custom_call.1} parent=1 // pred_check_branch
      %31 = sbr.rel (0) target = $region17
    $region16: #{tpu_custom_call.1} parent=1 // pred_region
      %s33 = ssub.s32 1024, 1024
      %34 = vsyncadd [#allocation3], %s33
      %s35 = sshll.u32 [#allocation2], 4
      %s36 = int_to_ptr.vmem [resolvable:$true] %s35
      %41 = dma.hbm_to_vmem [thread:$0]  %s3, 1024, %s36, [#allocation3], 64, 64, 4
    $region17: #{tpu_custom_call.1} parent=1 // pred_fallthru
      _
    // Predicated region
    $region18: #{tpu_custom_call.1} parent=1 // pred_check
      _
    $region19: #{tpu_custom_call.1} parent=1 // pred_check_branch
      %43 = sbr.rel (0) target = $region21
    $region20: #{tpu_custom_call.1} parent=1 // pred_region
      _
    $region21: #{tpu_custom_call.1} parent=1 // pred_fallthru
      _
    // Predicated region
    $region22: #{tpu_custom_call.1} parent=1 // pred_check
      _
    $region23: #{tpu_custom_call.1} parent=1 // pred_check_branch
      %45 = sbr.rel (0) target = $region25
    $region24: #{tpu_custom_call.1} parent=1 // pred_region
      _
    $region25: #{tpu_custom_call.1} parent=1 // pred_fallthru
      _
    // Predicated region
    $region26: #{tpu_custom_call.1} parent=1 // pred_check
      _
    $region27: #{tpu_custom_call.1} parent=1 // pred_check_branch
      %47 = sbr.rel (0) target = $region29
    $region28: #{tpu_custom_call.1} parent=1 // pred_region
      _
    $region29: #{tpu_custom_call.1} parent=1 // pred_fallthru
      _
    // Predicated region
    $region30: #{tpu_custom_call.1} parent=1 // pred_check
      _
    $region31: #{tpu_custom_call.1} parent=1 // pred_check_branch
      %49 = sbr.rel (0) target = $region33
    $region32: #{tpu_custom_call.1} parent=1 // pred_region
      %s51 = ssub.s32 1024, 1024
      %52 = vsyncadd [#allocation6], %s51
      %s53 = sshll.u32 [#allocation5], 4
      %s54 = int_to_ptr.vmem [resolvable:$true] %s53
      %59 = dma.hbm_to_vmem [thread:$0]  %s7, 1024, %s54, [#allocation6], 64, 64, 4
    $region33: #{tpu_custom_call.1} parent=1 // pred_fallthru
      _
    // Predicated region
    $region34: #{tpu_custom_call.1} parent=1 // pred_check
      _
    $region35: #{tpu_custom_call.1} parent=1 // pred_check_branch
      %61 = sbr.rel (0) target = $region37
    $region36: #{tpu_custom_call.1} parent=1 // pred_region
      _
    $region37: #{tpu_custom_call.1} parent=1 // pred_fallthru
      _
    // Predicated region
    $region38: #{tpu_custom_call.1} parent=1 // pred_check
      _
    $region39: #{tpu_custom_call.1} parent=1 // pred_check_branch
      %63 = sbr.rel (0) target = $region41
    $region40: #{tpu_custom_call.1} parent=1 // pred_region
      _
    $region41: #{tpu_custom_call.1} parent=1 // pred_fallthru
      _
    // Predicated region
    $region42: #{tpu_custom_call.1} parent=1 // pred_check
      _
    $region43: #{tpu_custom_call.1} parent=1 // pred_check_branch
      %65 = sbr.rel (0) target = $region45
    $region44: #{tpu_custom_call.1} parent=1 // pred_region
      _
    $region45: #{tpu_custom_call.1} parent=1 // pred_fallthru
      _
    // Predicated region
    $region46: #{tpu_custom_call.1} parent=1 // pred_check
      _
    $region47: #{tpu_custom_call.1} parent=1 // pred_check_branch
      %67 = sbr.rel (0) target = $region49
    $region48: #{tpu_custom_call.1} parent=1 // pred_region
      %s69 = ssub.s32 4096, 4096
      %70 = vsyncadd [#allocation6], %s69
      %s71 = sshll.u32 [#allocation7], 4
      %s72 = int_to_ptr.vmem [resolvable:$true] %s71
      %77 = dma.hbm_to_vmem [thread:$0]  %s11, 4096, %s72, [#allocation6], 256, 256, 16
    $region49: #{tpu_custom_call.1} parent=1 // pred_fallthru
      _
    // Predicated region
    $region50: #{tpu_custom_call.1} parent=1 // pred_check
      _
    $region51: #{tpu_custom_call.1} parent=1 // pred_check_branch
      %79 = sbr.rel (0) target = $region53
    $region52: #{tpu_custom_call.1} parent=1 // pred_region
      _
    $region53: #{tpu_custom_call.1} parent=1 // pred_fallthru
      _
    // Predicated region
    $region54: #{tpu_custom_call.1} parent=1 // pred_check
      _
    $region55: #{tpu_custom_call.1} parent=1 // pred_check_branch
      %81 = sbr.rel (0) target = $region57
    $region56: #{tpu_custom_call.1} parent=1 // pred_region
      %82 = dma.done [#allocation3], 1024
    $region57: #{tpu_custom_call.1} parent=1 // pred_fallthru
      _
    // Predicated region
    $region58: #{tpu_custom_call.1} parent=1 // pred_check
      _
    $region59: #{tpu_custom_call.1} parent=1 // pred_check_branch
      %84 = sbr.rel (0) target = $region61
    $region60: #{tpu_custom_call.1} parent=1 // pred_region
      %85 = dma.done [#allocation6], 1024
    $region61: #{tpu_custom_call.1} parent=1 // pred_fallthru
      _
    // Predicated region
    $region62: #{tpu_custom_call.1} parent=1 // pred_check
      _
    $region63: #{tpu_custom_call.1} parent=1 // pred_check_branch
      %87 = sbr.rel (0) target = $region65
    $region64: #{tpu_custom_call.1} parent=1 // pred_region
      %88 = dma.done [#allocation6], 4096
    $region65: #{tpu_custom_call.1} parent=1 // pred_fallthru
      _
    %v90 = vld [vmem:[%s2] sm:$0xff]
    %v91 = vld [vmem:[%s2 + $0x8] sm:$0xff]
    %v92 = vld [vmem:[%s0] sm:$0xf]
    %v93 = vld [vmem:[%s0 + $0x4] sm:$0xf]
    %v94 = vld [vmem:[#allocation2] sm:$0xf]
    %v95 = vld [vmem:[#allocation2 + $0x4] sm:$0xf]
    %v96 = vld [vmem:[#allocation2 + $0x8] sm:$0xf]
    %v97 = vld [vmem:[#allocation2 + $0xc] sm:$0xf]
    %v98 = vld [vmem:[#allocation2 + $0x10] sm:$0xf]
    %v99 = vld [vmem:[#allocation2 + $0x14] sm:$0xf]
    %v100 = vld [vmem:[#allocation2 + $0x18] sm:$0xf]
    %v101 = vld [vmem:[#allocation2 + $0x1c] sm:$0xf]
    %v102 = vld [vmem:[#allocation2 + $0x20] sm:$0xf]
    %v103 = vld [vmem:[#allocation2 + $0x24] sm:$0xf]
    %v104 = vld [vmem:[#allocation2 + $0x28] sm:$0xf]
    %v105 = vld [vmem:[#allocation2 + $0x2c] sm:$0xf]
    %v106 = vld [vmem:[#allocation2 + $0x30] sm:$0xf]
    %v107 = vld [vmem:[#allocation2 + $0x34] sm:$0xf]
    %v108 = vld [vmem:[#allocation2 + $0x38] sm:$0xf]
    %v109 = vld [vmem:[#allocation2 + $0x3c] sm:$0xf]
    %v110 = vld [vmem:[%s4] sm:$0x1]
    %v112 = vlaneseq
    %v113 = vshrl.u32 %v112, 7
    %v114 = vsub.s32 0, %v113
    %v115 = vrot.slane %v110, %v114
    %v119 = vunpack.c.l.b16 %v92
    %v120 = vunpack.c.l.b16 %v93
    %v121 = vpack.c.b16 %v120, %v119
    %v139 = vunpack.c.l.b16 %v94
    %v140 = vunpack.c.l.b16 %v95
    %v141 = vunpack.c.l.b16 %v96
    %v142 = vunpack.c.l.b16 %v97
    %v143 = vunpack.c.l.b16 %v98
    %v144 = vunpack.c.l.b16 %v99
    %v145 = vunpack.c.l.b16 %v100
    %v146 = vunpack.c.l.b16 %v101
    %v147 = vunpack.c.l.b16 %v102
    %v148 = vunpack.c.l.b16 %v103
    %v149 = vunpack.c.l.b16 %v104
    %v150 = vunpack.c.l.b16 %v105
    %v151 = vunpack.c.l.b16 %v106
    %v152 = vunpack.c.l.b16 %v107
    %v153 = vunpack.c.l.b16 %v108
    %v154 = vunpack.c.l.b16 %v109
    %v155 = vpack.c.b16 %v140, %v139
    %v156 = vpack.c.b16 %v142, %v141
    %v157 = vpack.c.b16 %v144, %v143
    %v158 = vpack.c.b16 %v146, %v145
    %v159 = vpack.c.b16 %v148, %v147
    %v160 = vpack.c.b16 %v150, %v149
    %v161 = vpack.c.b16 %v152, %v151
    %v162 = vpack.c.b16 %v154, %v153
    %171 = vmatprep.subr.bf16.mxu0 0
    %172 = vmatpush1.bf16.msra.mxu0 %v155
    %173 = vmatprep.subr.bf16.mxu0 0
    %174 = vmatpush1.bf16.msra.mxu0 %v156
    %175 = vmatprep.subr.bf16.mxu0 0
    %176 = vmatpush1.bf16.msra.mxu0 %v157
    %177 = vmatprep.subr.bf16.mxu0 0
    %178 = vmatpush1.bf16.msra.mxu0 %v158
    %179 = vmatprep.subr.bf16.mxu0 0
    %180 = vmatpush1.bf16.msra.mxu0 %v159
    %181 = vmatprep.subr.bf16.mxu0 0
    %182 = vmatpush1.bf16.msra.mxu0 %v160
    %183 = vmatprep.subr.bf16.mxu0 0
    %184 = vmatpush1.bf16.msra.mxu0 %v161
    %185 = vmatprep.subr.bf16.mxu0 0
    %186 = vmatpush1.bf16.msra.mxu0 %v162
    %187 = vmatprep.subr.bf16.mxu0 0
    %188 = vmatpush1.bf16.msra.mxu0 0
    %189 = vmatprep.subr.bf16.mxu0 0
    %190 = vmatpush1.bf16.msra.mxu0 0
    %191 = vmatprep.subr.bf16.mxu0 0
    %192 = vmatpush1.bf16.msra.mxu0 0
    %193 = vmatprep.subr.bf16.mxu0 0
    %194 = vmatpush1.bf16.msra.mxu0 0
    %195 = vmatprep.subr.bf16.mxu0 0
    %196 = vmatpush1.bf16.msra.mxu0 0
    %197 = vmatprep.subr.bf16.mxu0 0
    %198 = vmatpush1.bf16.msra.mxu0 0
    %199 = vmatprep.subr.bf16.mxu0 0
    %200 = vmatpush1.bf16.msra.mxu0 0
    %201 = vmatprep.subr.bf16.mxu0 0
    %202 = vmatpush1.bf16.msra.mxu0 0
    %203 = vmatprep.mubr.bf16.mxu0 0
    %204 = vmatmul.mubr.bf16.gmra.mrb[0].mxu0 %v121
    %v205 = vpop.f32.mrb[0].mxu0
    %v206 = vadd.f32 %v115, %v205
    %v207 = vpop.f32.mrb[0].mxu0
    %v208 = vpop.f32.mrb[0].mxu0
    %v209 = vadd.f32 %v115, %v208
    %v210 = vpop.f32.mrb[0].mxu0
    %211 = vdwg.mxu0
    %vm212 = vcmp.ge.f32.partialorder %v206, 0.0
    %vm213 = vcmp.ge.f32.partialorder %v209, 0.0
    %v214 = vmul.f32 %v206, 0.2
    %v215 = vmul.f32 %v209, 0.2
    %v216 = vsel %vm212, %v206, %v214
    %v217 = vsel %vm213, %v209, %v215
    %v218 = vld [vmem:[%s5] sm:$0x1]
    %v219 = vld [vmem:[%s6] sm:$0x1]
    %221 = vset.pattern.permute.xlu0 0
    %222 = vperm.xlu0 %221, %v90
    %v223 = vpop.permute.xlu0 %222
    %226 = vset.pattern.permute.xlu0 0
    %227 = vperm.xlu0 %226, %v91
    %v228 = vpop.permute.xlu0 %227
    %v230 = vmul.f32 %v216, %v223
    %v231 = vmul.f32 %v217, %v228
    %v232 = vadd.f32 %v230, %v231
    %v233 = vrot.slane %v232, 4
    %v234 = vadd.f32 %v232, %v233
    %v235 = vrot.slane %v234, 2
    %v236 = vadd.f32 %v234, %v235
    %v237 = vrot.slane %v236, 1
    %v238 = vadd.f32 %v236, %v237
    %v239 = vmul.f32 %v238, 0.07692308
    %v240 = vsub.f32 %v216, %v239
    %v241 = vsub.f32 %v217, %v239
    %v242 = vmul.f32 %v240, %v223
    %v243 = vmul.f32 %v241, %v228
    %v244 = vmul.f32 %v242, %v242
    %v245 = vmul.f32 %v243, %v243
    %v246 = vadd.f32 %v244, %v245
    %v247 = vrot.slane %v246, 4
    %v248 = vadd.f32 %v246, %v247
    %v249 = vrot.slane %v248, 2
    %v250 = vadd.f32 %v248, %v249
    %v251 = vrot.slane %v250, 1
    %v252 = vadd.f32 %v250, %v251
    %v253 = vmul.f32 %v252, 0.07692308
    %v254 = vadd.f32 %v253, 1e-05
    %v255 = vrsqrt.pop %v254
    %v256 = vmul.f32 %v255, %v218
    %v257 = vlaneseq
    %v258 = vshrl.u32 %v257, 7
    %v259 = vsub.s32 0, %v258
    %v260 = vrot.slane %v256, %v259
    %v261 = vmul.f32 %v240, %v260
    %v262 = vmul.f32 %v241, %v260
    %v264 = vlaneseq
    %v265 = vshrl.u32 %v264, 7
    %v266 = vsub.s32 0, %v265
    %v267 = vrot.slane %v219, %v266
    %v269 = vadd.f32 %v261, %v267
    %v270 = vadd.f32 %v262, %v267
    %v271 = vpack.c.bf16 %v270, %v269
    %v272 = vld [vmem:[#allocation5] sm:$0xf]
    %v273 = vld [vmem:[#allocation5 + $0x4] sm:$0xf]
    %v274 = vld [vmem:[#allocation5 + $0x8] sm:$0xf]
    %v275 = vld [vmem:[#allocation5 + $0xc] sm:$0xf]
    %v276 = vld [vmem:[#allocation5 + $0x10] sm:$0xf]
    %v277 = vld [vmem:[#allocation5 + $0x14] sm:$0xf]
    %v278 = vld [vmem:[#allocation5 + $0x18] sm:$0xf]
    %v279 = vld [vmem:[#allocation5 + $0x1c] sm:$0xf]
    %v280 = vld [vmem:[#allocation5 + $0x20] sm:$0xf]
    %v281 = vld [vmem:[#allocation5 + $0x24] sm:$0xf]
    %v282 = vld [vmem:[#allocation5 + $0x28] sm:$0xf]
    %v283 = vld [vmem:[#allocation5 + $0x2c] sm:$0xf]
    %v284 = vld [vmem:[#allocation5 + $0x30] sm:$0xf]
    %v285 = vld [vmem:[#allocation5 + $0x34] sm:$0xf]
    %v286 = vld [vmem:[#allocation5 + $0x38] sm:$0xf]
    %v287 = vld [vmem:[#allocation5 + $0x3c] sm:$0xf]
    %v288 = vld [vmem:[%s8] sm:$0x1]
    %v290 = vlaneseq
    %v291 = vshrl.u32 %v290, 7
    %v292 = vsub.s32 0, %v291
    %v293 = vrot.slane %v288, %v292
    %v311 = vunpack.c.l.b16 %v272
    %v312 = vunpack.c.l.b16 %v273
    %v313 = vunpack.c.l.b16 %v274
    %v314 = vunpack.c.l.b16 %v275
    %v315 = vunpack.c.l.b16 %v276
    %v316 = vunpack.c.l.b16 %v277
    %v317 = vunpack.c.l.b16 %v278
    %v318 = vunpack.c.l.b16 %v279
    %v319 = vunpack.c.l.b16 %v280
    %v320 = vunpack.c.l.b16 %v281
    %v321 = vunpack.c.l.b16 %v282
    %v322 = vunpack.c.l.b16 %v283
    %v323 = vunpack.c.l.b16 %v284
    %v324 = vunpack.c.l.b16 %v285
    %v325 = vunpack.c.l.b16 %v286
    %v326 = vunpack.c.l.b16 %v287
    %v327 = vpack.c.b16 %v312, %v311
    %v328 = vpack.c.b16 %v314, %v313
    %v329 = vpack.c.b16 %v316, %v315
    %v330 = vpack.c.b16 %v318, %v317
    %v331 = vpack.c.b16 %v320, %v319
    %v332 = vpack.c.b16 %v322, %v321
    %v333 = vpack.c.b16 %v324, %v323
    %v334 = vpack.c.b16 %v326, %v325
    %343 = vmatprep.subr.bf16.mxu0 0
    %344 = vmatpush1.bf16.msra.mxu0 %v327
    %345 = vmatprep.subr.bf16.mxu0 0
    %346 = vmatpush1.bf16.msra.mxu0 %v328
    %347 = vmatprep.subr.bf16.mxu0 0
    %348 = vmatpush1.bf16.msra.mxu0 %v329
    %349 = vmatprep.subr.bf16.mxu0 0
    %350 = vmatpush1.bf16.msra.mxu0 %v330
    %351 = vmatprep.subr.bf16.mxu0 0
    %352 = vmatpush1.bf16.msra.mxu0 %v331
    %353 = vmatprep.subr.bf16.mxu0 0
    %354 = vmatpush1.bf16.msra.mxu0 %v332
    %355 = vmatprep.subr.bf16.mxu0 0
    %356 = vmatpush1.bf16.msra.mxu0 %v333
    %357 = vmatprep.subr.bf16.mxu0 0
    %358 = vmatpush1.bf16.msra.mxu0 %v334
    %359 = vmatprep.subr.bf16.mxu0 0
    %360 = vmatpush1.bf16.msra.mxu0 0
    %361 = vmatprep.subr.bf16.mxu0 0
    %362 = vmatpush1.bf16.msra.mxu0 0
    %363 = vmatprep.subr.bf16.mxu0 0
    %364 = vmatpush1.bf16.msra.mxu0 0
    %365 = vmatprep.subr.bf16.mxu0 0
    %366 = vmatpush1.bf16.msra.mxu0 0
    %367 = vmatprep.subr.bf16.mxu0 0
    %368 = vmatpush1.bf16.msra.mxu0 0
    %369 = vmatprep.subr.bf16.mxu0 0
    %370 = vmatpush1.bf16.msra.mxu0 0
    %371 = vmatprep.subr.bf16.mxu0 0
    %372 = vmatpush1.bf16.msra.mxu0 0
    %373 = vmatprep.subr.bf16.mxu0 0
    %374 = vmatpush1.bf16.msra.mxu0 0
    %375 = vmatprep.mubr.bf16.mxu0 0
    %376 = vmatmul.mubr.bf16.gmra.mrb[0].mxu0 %v271
    %v377 = vpop.f32.mrb[0].mxu0
    %v378 = vadd.f32 %v293, %v377
    %v379 = vpop.f32.mrb[0].mxu0
    %v380 = vpop.f32.mrb[0].mxu0
    %v381 = vadd.f32 %v293, %v380
    %v382 = vpop.f32.mrb[0].mxu0
    %383 = vdwg.mxu0
    %vm384 = vcmp.ge.f32.partialorder %v378, 0.0
    %vm385 = vcmp.ge.f32.partialorder %v381, 0.0
    %v386 = vmul.f32 %v378, 0.2
    %v387 = vmul.f32 %v381, 0.2
    %v388 = vsel %vm384, %v378, %v386
    %v389 = vsel %vm385, %v381, %v387
    %v390 = vld [vmem:[%s9] sm:$0x1]
    %v391 = vld [vmem:[%s10] sm:$0x1]
    %v392 = vmul.f32 %v388, %v223
    %v393 = vmul.f32 %v389, %v228
    %v394 = vadd.f32 %v392, %v393
    %v395 = vrot.slane %v394, 4
    %v396 = vadd.f32 %v394, %v395
    %v397 = vrot.slane %v396, 2
    %v398 = vadd.f32 %v396, %v397
    %v399 = vrot.slane %v398, 1
    %v400 = vadd.f32 %v398, %v399
    %v401 = vmul.f32 %v400, 0.07692308
    %v402 = vsub.f32 %v388, %v401
    %v403 = vsub.f32 %v389, %v401
    %v404 = vmul.f32 %v402, %v223
    %v405 = vmul.f32 %v403, %v228
    %v406 = vmul.f32 %v404, %v404
    %v407 = vmul.f32 %v405, %v405
    %v408 = vadd.f32 %v406, %v407
    %v409 = vrot.slane %v408, 4
    %v410 = vadd.f32 %v408, %v409
    %v411 = vrot.slane %v410, 2
    %v412 = vadd.f32 %v410, %v411
    %v413 = vrot.slane %v412, 1
    %v414 = vadd.f32 %v412, %v413
    %v415 = vmul.f32 %v414, 0.07692308
    %v416 = vadd.f32 %v415, 1e-05
    %v417 = vrsqrt.pop %v416
    %v418 = vmul.f32 %v417, %v390
    %v419 = vlaneseq
    %v420 = vshrl.u32 %v419, 7
    %v421 = vsub.s32 0, %v420
    %v422 = vrot.slane %v418, %v421
    %v423 = vmul.f32 %v402, %v422
    %v424 = vmul.f32 %v403, %v422
    %v426 = vlaneseq
    %v427 = vshrl.u32 %v426, 7
    %v428 = vsub.s32 0, %v427
    %v429 = vrot.slane %v391, %v428
    %v431 = vadd.f32 %v423, %v429
    %v432 = vadd.f32 %v424, %v429
    %v433 = vpack.c.bf16 %v432, %v431
    %v434 = vld [vmem:[#allocation7] sm:$0xff]
    %v435 = vld [vmem:[#allocation7 + $0x8] sm:$0xff]
    %v436 = vld [vmem:[#allocation7 + $0x10] sm:$0xff]
    %v437 = vld [vmem:[#allocation7 + $0x18] sm:$0xff]
    %v438 = vld [vmem:[#allocation7 + $0x20] sm:$0xff]
    %v439 = vld [vmem:[#allocation7 + $0x28] sm:$0xff]
    %v440 = vld [vmem:[#allocation7 + $0x30] sm:$0xff]
    %v441 = vld [vmem:[#allocation7 + $0x38] sm:$0xff]
    %v442 = vld [vmem:[#allocation7 + $0x40] sm:$0xff]
    %v443 = vld [vmem:[#allocation7 + $0x48] sm:$0xff]
    %v444 = vld [vmem:[#allocation7 + $0x50] sm:$0xff]
    %v445 = vld [vmem:[#allocation7 + $0x58] sm:$0xff]
    %v446 = vld [vmem:[#allocation7 + $0x60] sm:$0xff]
    %v447 = vld [vmem:[#allocation7 + $0x68] sm:$0xff]
    %v448 = vld [vmem:[#allocation7 + $0x70] sm:$0xff]
    %v449 = vld [vmem:[#allocation7 + $0x78] sm:$0xff]
    %v450 = vld [vmem:[#allocation7 + $0x80] sm:$0xff]
    %v451 = vld [vmem:[#allocation7 + $0x88] sm:$0xff]
    %v452 = vld [vmem:[#allocation7 + $0x90] sm:$0xff]
    %v453 = vld [vmem:[#allocation7 + $0x98] sm:$0xff]
    %v454 = vld [vmem:[#allocation7 + $0xa0] sm:$0xff]
    %v455 = vld [vmem:[#allocation7 + $0xa8] sm:$0xff]
    %v456 = vld [vmem:[#allocation7 + $0xb0] sm:$0xff]
    %v457 = vld [vmem:[#allocation7 + $0xb8] sm:$0xff]
    %v458 = vld [vmem:[#allocation7 + $0xc0] sm:$0xff]
    %v459 = vld [vmem:[#allocation7 + $0xc8] sm:$0xff]
    %v460 = vld [vmem:[#allocation7 + $0xd0] sm:$0xff]
    %v461 = vld [vmem:[#allocation7 + $0xd8] sm:$0xff]
    %v462 = vld [vmem:[#allocation7 + $0xe0] sm:$0xff]
    %v463 = vld [vmem:[#allocation7 + $0xe8] sm:$0xff]
    %v464 = vld [vmem:[#allocation7 + $0xf0] sm:$0xff]
    %v465 = vld [vmem:[#allocation7 + $0xf8] sm:$0xff]
    %v498 = vunpack.c.l.b16 %v434
    %v499 = vunpack.c.h.b16 %v434
    %v500 = vunpack.c.l.b16 %v435
    %v501 = vunpack.c.h.b16 %v435
    %v502 = vunpack.c.l.b16 %v436
    %v503 = vunpack.c.h.b16 %v436
    %v504 = vunpack.c.l.b16 %v437
    %v505 = vunpack.c.h.b16 %v437
    %v506 = vunpack.c.l.b16 %v438
    %v507 = vunpack.c.h.b16 %v438
    %v508 = vunpack.c.l.b16 %v439
    %v509 = vunpack.c.h.b16 %v439
    %v510 = vunpack.c.l.b16 %v440
    %v511 = vunpack.c.h.b16 %v440
    %v512 = vunpack.c.l.b16 %v441
    %v513 = vunpack.c.h.b16 %v441
    %v514 = vunpack.c.l.b16 %v442
    %v515 = vunpack.c.h.b16 %v442
    %v516 = vunpack.c.l.b16 %v443
    %v517 = vunpack.c.h.b16 %v443
    %v518 = vunpack.c.l.b16 %v444
    %v519 = vunpack.c.h.b16 %v444
    %v520 = vunpack.c.l.b16 %v445
    %v521 = vunpack.c.h.b16 %v445
    %v522 = vunpack.c.l.b16 %v446
    %v523 = vunpack.c.h.b16 %v446
    %v524 = vunpack.c.l.b16 %v447
    %v525 = vunpack.c.h.b16 %v447
    %v526 = vunpack.c.l.b16 %v448
    %v527 = vunpack.c.h.b16 %v448
    %v528 = vunpack.c.l.b16 %v449
    %v529 = vunpack.c.h.b16 %v449
    %v530 = vunpack.c.l.b16 %v450
    %v531 = vunpack.c.h.b16 %v450
    %v532 = vunpack.c.l.b16 %v451
    %v533 = vunpack.c.h.b16 %v451
    %v534 = vunpack.c.l.b16 %v452
    %v535 = vunpack.c.h.b16 %v452
    %v536 = vunpack.c.l.b16 %v453
    %v537 = vunpack.c.h.b16 %v453
    %v538 = vunpack.c.l.b16 %v454
    %v539 = vunpack.c.h.b16 %v454
    %v540 = vunpack.c.l.b16 %v455
    %v541 = vunpack.c.h.b16 %v455
    %v542 = vunpack.c.l.b16 %v456
    %v543 = vunpack.c.h.b16 %v456
    %v544 = vunpack.c.l.b16 %v457
    %v545 = vunpack.c.h.b16 %v457
    %v546 = vunpack.c.l.b16 %v458
    %v547 = vunpack.c.h.b16 %v458
    %v548 = vunpack.c.l.b16 %v459
    %v549 = vunpack.c.h.b16 %v459
    %v550 = vunpack.c.l.b16 %v460
    %v551 = vunpack.c.h.b16 %v460
    %v552 = vunpack.c.l.b16 %v461
    %v553 = vunpack.c.h.b16 %v461
    %v554 = vunpack.c.l.b16 %v462
    %v555 = vunpack.c.h.b16 %v462
    %v556 = vunpack.c.l.b16 %v463
    %v557 = vunpack.c.h.b16 %v463
    %v558 = vunpack.c.l.b16 %v464
    %v559 = vunpack.c.h.b16 %v464
    %v560 = vunpack.c.l.b16 %v465
    %v561 = vunpack.c.h.b16 %v465
    %v562 = vpack.c.b16 %v502, %v498
    %v563 = vpack.c.b16 %v503, %v499
    %v564 = vpack.c.b16 %v504, %v500
    %v565 = vpack.c.b16 %v505, %v501
    %v566 = vpack.c.b16 %v510, %v506
    %v567 = vpack.c.b16 %v511, %v507
    %v568 = vpack.c.b16 %v512, %v508
    %v569 = vpack.c.b16 %v513, %v509
    %v570 = vpack.c.b16 %v518, %v514
    %v571 = vpack.c.b16 %v519, %v515
    %v572 = vpack.c.b16 %v520, %v516
    %v573 = vpack.c.b16 %v521, %v517
    %v574 = vpack.c.b16 %v526, %v522
    %v575 = vpack.c.b16 %v527, %v523
    %v576 = vpack.c.b16 %v528, %v524
    %v577 = vpack.c.b16 %v529, %v525
    %v578 = vpack.c.b16 %v534, %v530
    %v579 = vpack.c.b16 %v535, %v531
    %v580 = vpack.c.b16 %v536, %v532
    %v581 = vpack.c.b16 %v537, %v533
    %v582 = vpack.c.b16 %v542, %v538
    %v583 = vpack.c.b16 %v543, %v539
    %v584 = vpack.c.b16 %v544, %v540
    %v585 = vpack.c.b16 %v545, %v541
    %v586 = vpack.c.b16 %v550, %v546
    %v587 = vpack.c.b16 %v551, %v547
    %v588 = vpack.c.b16 %v552, %v548
    %v589 = vpack.c.b16 %v553, %v549
    %v590 = vpack.c.b16 %v558, %v554
    %v591 = vpack.c.b16 %v559, %v555
    %v592 = vpack.c.b16 %v560, %v556
    %v593 = vpack.c.b16 %v561, %v557
    %626 = vmatprep.subr.bf16.mxu0 %v563
    %627 = vmatpush1.bf16.msra.mxu0 %v562
    %628 = vmatprep.subr.bf16.mxu0 %v567
    %629 = vmatpush1.bf16.msra.mxu0 %v566
    %630 = vmatprep.subr.bf16.mxu0 %v571
    %631 = vmatpush1.bf16.msra.mxu0 %v570
    %632 = vmatprep.subr.bf16.mxu0 %v575
    %633 = vmatpush1.bf16.msra.mxu0 %v574
    %634 = vmatprep.subr.bf16.mxu0 %v579
    %635 = vmatpush1.bf16.msra.mxu0 %v578
    %636 = vmatprep.subr.bf16.mxu0 %v583
    %637 = vmatpush1.bf16.msra.mxu0 %v582
    %638 = vmatprep.subr.bf16.mxu0 %v587
    %639 = vmatpush1.bf16.msra.mxu0 %v586
    %640 = vmatprep.subr.bf16.mxu0 %v591
    %641 = vmatpush1.bf16.msra.mxu0 %v590
    %642 = vmatprep.subr.bf16.mxu0 0
    %643 = vmatpush1.bf16.msra.mxu0 0
    %644 = vmatprep.subr.bf16.mxu0 0
    %645 = vmatpush1.bf16.msra.mxu0 0
    %646 = vmatprep.subr.bf16.mxu0 0
    %647 = vmatpush1.bf16.msra.mxu0 0
    %648 = vmatprep.subr.bf16.mxu0 0
    %649 = vmatpush1.bf16.msra.mxu0 0
    %650 = vmatprep.subr.bf16.mxu0 0
    %651 = vmatpush1.bf16.msra.mxu0 0
    %652 = vmatprep.subr.bf16.mxu0 0
    %653 = vmatpush1.bf16.msra.mxu0 0
    %654 = vmatprep.subr.bf16.mxu0 0
    %655 = vmatpush1.bf16.msra.mxu0 0
    %656 = vmatprep.subr.bf16.mxu0 0
    %657 = vmatpush1.bf16.msra.mxu0 0
    %658 = vmatprep.mubr.bf16.mxu0 0
    %659 = vmatmul.mubr.bf16.gmra.mrb[0].mxu0 %v433
    %v660 = vpop.f32.mrb[0].mxu0
    %v661 = vadd.f32 0.0, %v660
    %v662 = vpop.f32.mrb[0].mxu0
    %v663 = vadd.f32 0.0, %v662
    %v664 = vpop.f32.mrb[0].mxu0
    %v665 = vadd.f32 0.0, %v664
    %v666 = vpop.f32.mrb[0].mxu0
    %v667 = vadd.f32 0.0, %v666
    %668 = vdwg.mxu0
    %669 = vmatprep.subr.bf16.mxu0 %v565
    %670 = vmatpush1.bf16.msra.mxu0 %v564
    %671 = vmatprep.subr.bf16.mxu0 %v569
    %672 = vmatpush1.bf16.msra.mxu0 %v568
    %673 = vmatprep.subr.bf16.mxu0 %v573
    %674 = vmatpush1.bf16.msra.mxu0 %v572
    %675 = vmatprep.subr.bf16.mxu0 %v577
    %676 = vmatpush1.bf16.msra.mxu0 %v576
    %677 = vmatprep.subr.bf16.mxu0 %v581
    %678 = vmatpush1.bf16.msra.mxu0 %v580
    %679 = vmatprep.subr.bf16.mxu0 %v585
    %680 = vmatpush1.bf16.msra.mxu0 %v584
    %681 = vmatprep.subr.bf16.mxu0 %v589
    %682 = vmatpush1.bf16.msra.mxu0 %v588
    %683 = vmatprep.subr.bf16.mxu0 %v593
    %684 = vmatpush1.bf16.msra.mxu0 %v592
    %685 = vmatprep.subr.bf16.mxu0 0
    %686 = vmatpush1.bf16.msra.mxu0 0
    %687 = vmatprep.subr.bf16.mxu0 0
    %688 = vmatpush1.bf16.msra.mxu0 0
    %689 = vmatprep.subr.bf16.mxu0 0
    %690 = vmatpush1.bf16.msra.mxu0 0
    %691 = vmatprep.subr.bf16.mxu0 0
    %692 = vmatpush1.bf16.msra.mxu0 0
    %693 = vmatprep.subr.bf16.mxu0 0
    %694 = vmatpush1.bf16.msra.mxu0 0
    %695 = vmatprep.subr.bf16.mxu0 0
    %696 = vmatpush1.bf16.msra.mxu0 0
    %697 = vmatprep.subr.bf16.mxu0 0
    %698 = vmatpush1.bf16.msra.mxu0 0
    %699 = vmatprep.subr.bf16.mxu0 0
    %700 = vmatpush1.bf16.msra.mxu0 0
    %701 = vmatprep.mubr.bf16.mxu0 0
    %702 = vmatmul.mubr.bf16.gmra.mrb[0].mxu0 %v433
    %v703 = vpop.f32.mrb[0].mxu0
    %v704 = vadd.f32 0.0, %v703
    %v705 = vpop.f32.mrb[0].mxu0
    %v706 = vadd.f32 0.0, %v705
    %v707 = vpop.f32.mrb[0].mxu0
    %v708 = vadd.f32 0.0, %v707
    %v709 = vpop.f32.mrb[0].mxu0
    %v710 = vadd.f32 0.0, %v709
    %711 = vdwg.mxu0
    %v712 = vld [vmem:[%s12] sm:$0x3]
    %v714 = vlaneseq
    %v715 = vshrl.u32 %v714, 7
    %v716 = vsub.s32 0, %v715
    %v717 = vrot.slane %v712, %v716
    %v718 = vlaneseq
    %v719 = vshrl.u32 %v718, 7
    %v720 = vsub.s32 1, %v719
    %v721 = vrot.slane %v712, %v720
    %v724 = vadd.f32 %v661, %v717
    %v725 = vadd.f32 %v663, %v721
    %v726 = vadd.f32 %v665, %v717
    %v727 = vadd.f32 %v667, %v721
    %v728 = vmax.f32 %v724, %v725
    %729 = vmax.xlane.f32.xlu0 %v728
    %v730 = vpop.xlane.xlu0 %729
    %v731 = vmax.f32 %v726, %v727
    %732 = vmax.xlane.f32.xlu0 %v731
    %v733 = vpop.xlane.xlu0 %732
    %v734 = vsub.f32 %v724, %v730
    %v735 = vsub.f32 %v725, %v730
    %v736 = vsub.f32 %v726, %v733
    %v737 = vsub.f32 %v727, %v733
    %v738 = vmul.f32 %v734, 1.442695
    %v739 = vpow.pop %v738
    %v740 = vmul.f32 %v735, 1.442695
    %v741 = vpow.pop %v740
    %v742 = vmul.f32 %v736, 1.442695
    %v743 = vpow.pop %v742
    %v744 = vmul.f32 %v737, 1.442695
    %v745 = vpow.pop %v744
    %v746 = vadd.f32 %v739, %v741
    %747 = vadd.xlane.f32.xlu0 %v746
    %v748 = vpop.xlane.xlu0 %747
    %v749 = vadd.f32 %v743, %v745
    %750 = vadd.xlane.f32.xlu0 %v749
    %v751 = vpop.xlane.xlu0 %750
    %v752 = vld [vmem:[%s1] sm:$0xff]
    %v753 = vld [vmem:[%s1 + $0x8] sm:$0xff]
    %v754 = vrcp.pop %v748
    %v755 = vrcp.pop %v751
    %v756 = vmul.f32 %v752, %v754
    %v757 = vmul.f32 %v753, %v755
    %759 = vset.pattern.permute.xlu0 0
    %760 = vperm.xlu0 %759, %v756
    %v761 = vpop.permute.xlu0 %760
    %764 = vset.pattern.permute.xlu0 0
    %765 = vperm.xlu0 %764, %v757
    %v766 = vpop.permute.xlu0 %765
    %v768 = vmul.f32 %v739, %v761
    %v769 = vmul.f32 %v741, %v761
    %v770 = vmul.f32 %v743, %v766
    %v771 = vmul.f32 %v745, %v766
    %v772 = vpack.c.bf16 %v770, %v768
    %v773 = vpack.c.bf16 %v771, %v769
    %v776 = vunpack.c.l.b16 %v772
    %v777 = vunpack.c.l.b16 %v773
    %v778 = vunpack.c.h.b16 %v772
    %v779 = vunpack.c.h.b16 %v773
    %v780 = vpack.c.b16 %v777, %v776
    %v781 = vpack.c.b16 %v779, %v778
    %784 = vst [vmem:[#allocation8] sm:$0xff] %v780
    %785 = vst [vmem:[#allocation8 + $0x8] sm:$0xff] %v781
    %v786 = vmax.f32 %v704, 0.0
    %v787 = vmax.f32 %v706, 0.0
    %v788 = vmax.f32 %v708, 0.0
    %v789 = vmax.f32 %v710, 0.0
    %vm790 = vcmp.ne.f32.partialorder %v704, %v704
    %vm791 = vcmp.ne.f32.partialorder %v706, %v706
    %vm792 = vcmp.ne.f32.partialorder %v708, %v708
    %vm793 = vcmp.ne.f32.partialorder %v710, %v710
    %v794 = vadd.f32 %v704, 0.0
    %v795 = vadd.f32 %v706, 0.0
    %v796 = vadd.f32 %v708, 0.0
    %v797 = vadd.f32 %v710, 0.0
    %v798 = vand.u32 2147483647, %v704
    %v799 = vand.u32 2147483647, %v706
    %v800 = vand.u32 2147483647, %v708
    %v801 = vand.u32 2147483647, %v710
    %v802 = vsub.f32 0.0, %v798
    %v803 = vsub.f32 0.0, %v799
    %v804 = vsub.f32 0.0, %v800
    %v805 = vsub.f32 0.0, %v801
    %v806 = vmul.f32 %v802, 1.442695
    %v807 = vpow.pop %v806
    %v808 = vmul.f32 %v803, 1.442695
    %v809 = vpow.pop %v808
    %v810 = vmul.f32 %v804, 1.442695
    %v811 = vpow.pop %v810
    %v812 = vmul.f32 %v805, 1.442695
    %v813 = vpow.pop %v812
    %v814 = vadd.f32 %v807, 1.0
    %v815 = vlog2.pop %v814
    %v816 = vmul.f32 %v815, 0.6931472
    %v817 = vmul.f32 -0.5, %v807
    %v818 = vadd.f32 %v817, 1.0
    %v819 = vmul.f32 %v818, %v807
    %v820 = vand.u32 2147483647, %v807
    %vm821 = vcmp.lt.f32.partialorder %v820, 0.0004427343
    %v822 = vsel %vm821, %v819, %v816
    %v823 = vadd.f32 %v809, 1.0
    %v824 = vlog2.pop %v823
    %v825 = vmul.f32 %v824, 0.6931472
    %v826 = vmul.f32 -0.5, %v809
    %v827 = vadd.f32 %v826, 1.0
    %v828 = vmul.f32 %v827, %v809
    %v829 = vand.u32 2147483647, %v809
    %vm830 = vcmp.lt.f32.partialorder %v829, 0.0004427343
    %v831 = vsel %vm830, %v828, %v825
    %v832 = vadd.f32 %v811, 1.0
    %v833 = vlog2.pop %v832
    %v834 = vmul.f32 %v833, 0.6931472
    %v835 = vmul.f32 -0.5, %v811
    %v836 = vadd.f32 %v835, 1.0
    %v837 = vmul.f32 %v836, %v811
    %v838 = vand.u32 2147483647, %v811
    %vm839 = vcmp.lt.f32.partialorder %v838, 0.0004427343
    %v840 = vsel %vm839, %v837, %v834
    %v841 = vadd.f32 %v813, 1.0
    %v842 = vlog2.pop %v841
    %v843 = vmul.f32 %v842, 0.6931472
    %v844 = vmul.f32 -0.5, %v813
    %v845 = vadd.f32 %v844, 1.0
    %v846 = vmul.f32 %v845, %v813
    %v847 = vand.u32 2147483647, %v813
    %vm848 = vcmp.lt.f32.partialorder %v847, 0.0004427343
    %v849 = vsel %vm848, %v846, %v843
    %v850 = vadd.f32 %v786, %v822
    %v851 = vadd.f32 %v787, %v831
    %v852 = vadd.f32 %v788, %v840
    %v853 = vadd.f32 %v789, %v849
    %v854 = vsel %vm790, %v794, %v850
    %v855 = vsel %vm791, %v795, %v851
    %v856 = vsel %vm792, %v796, %v852
    %v857 = vsel %vm793, %v797, %v853
    %v858 = vpack.c.bf16 %v856, %v854
    %v859 = vpack.c.bf16 %v857, %v855
    %v862 = vunpack.c.l.b16 %v858
    %v863 = vunpack.c.l.b16 %v859
    %v864 = vunpack.c.h.b16 %v858
    %v865 = vunpack.c.h.b16 %v859
    %v866 = vpack.c.b16 %v863, %v862
    %v867 = vpack.c.b16 %v865, %v864
    %870 = vst [vmem:[#allocation9] sm:$0xff] %v866
    %871 = vst [vmem:[#allocation9 + $0x8] sm:$0xff] %v867
    // Predicated region
    $region66: #{tpu_custom_call.1} parent=1 // pred_check
      _
    $region67: #{tpu_custom_call.1} parent=1 // pred_check_branch
      %873 = sbr.rel (0) target = $region69
    $region68: #{tpu_custom_call.1} parent=1 // pred_region
      %s875 = ssub.s32 256, 256
      %876 = vsyncadd [#allocation4], %s875
      %s877 = sshll.u32 [#allocation8], 4
      %s878 = int_to_ptr.vmem [resolvable:$true] %s877
      %883 = dma.vmem_to_hbm [thread:$0]  %s878, 256, %s13, [#allocation4], 128, 128, 8
    $region69: #{tpu_custom_call.1} parent=1 // pred_fallthru
      _
    // Predicated region
    $region70: #{tpu_custom_call.1} parent=1 // pred_check
      _
    $region71: #{tpu_custom_call.1} parent=1 // pred_check_branch
      %885 = sbr.rel (0) target = $region73
    $region72: #{tpu_custom_call.1} parent=1 // pred_region
      %s887 = ssub.s32 256, 256
      %888 = vsyncadd [#allocation10], %s887
      %s889 = sshll.u32 [#allocation9], 4
      %s890 = int_to_ptr.vmem [resolvable:$true] %s889
      %895 = dma.vmem_to_hbm [thread:$0]  %s890, 256, %s14, [#allocation10], 128, 128, 8
    $region73: #{tpu_custom_call.1} parent=1 // pred_fallthru
      _
    // Predicated region
    $region74: #{tpu_custom_call.1} parent=1 // pred_check
      _
    $region75: #{tpu_custom_call.1} parent=1 // pred_check_branch
      %897 = sbr.rel (0) target = $region77
    $region76: #{tpu_custom_call.1} parent=1 // pred_region
      %898 = dma.done [#allocation4], 256
    $region77: #{tpu_custom_call.1} parent=1 // pred_fallthru
      _
    // Predicated region
    $region78: #{tpu_custom_call.1} parent=1 // pred_check
      _
    $region79: #{tpu_custom_call.1} parent=1 // pred_check_branch
      %900 = sbr.rel (0) target = $region81
    $region80: #{tpu_custom_call.1} parent=1 // pred_region
      %901 = dma.done [#allocation10], 256
    $region81: #{tpu_custom_call.1} parent=1 // pred_fallthru
      _
    %902 = vsyncpa [#allocation3], 1
    %903 = vsyncpa [#allocation6], 1
    %904 = vsyncpa [#allocation4], 1
    %905 = vsyncpa [#allocation10], 1

</llo_original>
